<compile_context>
chip_gen: v7x
topology: tpu7x:2x2x1
jax: 0.10.0
libtpu: 0.0.40
codegen_flags: <defaults>
</compile_context>

<pallas_src>
import functools
import math

import jax
import jax.numpy as jnp
from jax import lax
from jax.experimental import pallas as pl
from jax.experimental.pallas import tpu as pltpu


def _round_up(x, m):
    return ((x + m - 1) // m) * m


def _cdiv(a, b):
    return (a + b - 1) // b


def _softmax(logits):
    m = jnp.max(logits, axis=-1, keepdims=True)
    p = jnp.exp(logits - m)
    # Exact f32 normalization: attention weights are returned to the caller,
    # so rows must sum to 1 (the approx EUP reciprocal is not tight enough).
    return p / jnp.sum(p, axis=-1, keepdims=True)


# Weight-slab column order: 0 = q_user, 1 = q_item (k/v projections hoisted).
def cd_attention_kernel(qu_ref, qi_ref, ku_ref, vu_ref, ki_ref,
                        w_ref, b_ref, mask_ref, out_ref, attn_ref,
                        *, ep, alpha):
    mask = mask_ref[...]                                     # [1, nkp] additive

    # q-side projections (1/scale already folded into W/b), bf16 MXU operands.
    q_user = (jnp.dot(qu_ref[...], w_ref[:, 0:ep],
                      preferred_element_type=jnp.float32)
              + b_ref[:, 0:ep]).astype(jnp.bfloat16)
    q_item = (jnp.dot(qi_ref[...], w_ref[:, ep:2 * ep],
                      preferred_element_type=jnp.float32)
              + b_ref[:, ep:2 * ep]).astype(jnp.bfloat16)

    # Q @ K^T transpose-free: contract the last dims of both operands.
    logits_user = lax.dot_general(
        q_user, ku_ref[...], dimension_numbers=(((1,), (1,)), ((), ())),
        preferred_element_type=jnp.float32) + mask
    logits_item = lax.dot_general(
        q_item, ki_ref[...], dimension_numbers=(((1,), (1,)), ((), ())),
        preferred_element_type=jnp.float32) + mask

    attn_user = _softmax(logits_user)
    attn_item = _softmax(logits_item)
    attn = alpha * attn_user + (1.0 - alpha) * attn_item

    out_ref[...] = jnp.dot(attn.astype(jnp.bfloat16), vu_ref[...],
                           preferred_element_type=jnp.float32)
    attn_ref[...] = attn.astype(attn_ref.dtype)


def _vmem_cap_bytes():
    """Generation-aware VMEM ceiling (25% headroom, never above 100 MiB)."""
    try:
        cap = int(pltpu.get_tpu_info().vmem_capacity_bytes)
    except Exception:
        cap = 128 << 20          # v5e/v6e physical; conservative fallback
    return min(cap * 3 // 4, 100 << 20)


def _vmem_limit_bytes(bq, ep, nkp, attn_bytes, cap):
    bf16, f32 = 2, 4
    tiled_in = 2 * (2 * bq * ep * bf16)                    # Q_user/Q_item, dbl-buf
    resident = 2 * (3 * nkp * ep * bf16                    # projected K_u/V_u/K_i
                    + ep * 2 * ep * bf16                   # packed q-side weights
                    + 8 * 2 * ep * f32                     # bias slab (sublane pad)
                    + 8 * nkp * f32)                       # mask (sublane pad)
    tiled_out = 2 * (bq * ep * f32 + bq * nkp * attn_bytes)
    interm = (2 * bq * ep + 4 * bq * nkp) * f32
    est = tiled_in + resident + tiled_out + interm
    return max(16 << 20, min(int(est * 1.5) + (2 << 20), cap))


def cd_user_item_attention(Q_user, K_user, V_user, Q_item, K_item, params,
                           alpha=0.9, block_q=256,
                           attn_store_dtype=jnp.bfloat16):
    """Pallas forward of CDUserItemAttention.

    params holds PyTorch-layout Linear weights: name+"_w" is [out, in],
    name+"_b" is [out].  Returns (out, attn_weights), both float32.
    """
    n_q, e = Q_user.shape
    n_k = K_user.shape[0]
    inv_scale = 1.0 / math.sqrt(e)
    f32 = jnp.float32

    ep = _round_up(e, 128)
    nkp = _round_up(n_k, 128)
    attn_bytes = jnp.dtype(attn_store_dtype).itemsize
    cap = _vmem_cap_bytes()

    # ---- row-tile selection --------------------------------------------
    nq8 = _round_up(n_q, 8)
    # >= ceil(n_q/block_q) tiles; >= 2 tiles when possible (both v7x TCs get
    # work); never below 8 rows per tile; last-tile padding kept minimal.
    n_tiles = max(_cdiv(n_q, block_q), 2)
    n_tiles = max(1, min(n_tiles, nq8 // 8))
    bq = _round_up(_cdiv(nq8, n_tiles), 8)

    def _live_bytes(bq_):
        # 4 live [bq,nkp] f32 arrays + double-buffered output tiles.
        return (4 * bq_ * nkp * 4 + 2 * bq_ * ep * 4
                + 2 * bq_ * nkp * attn_bytes)

    # Shrink the row tile when intermediates approach the budget (v7x 64 MiB).
    # TODO(synk): add a key-axis grid with an online softmax for very large n_k.
    while bq > 8 and _live_bytes(bq) > cap // 2:
        bq = max(8, _round_up(bq // 2, 8))

    nqp = _round_up(nq8, bq)
    grid = (nqp // bq,)

    def pad2(x, r, c):
        return jnp.pad(x.astype(f32),
                       ((0, r - x.shape[0]), (0, c - x.shape[1])))

    def linear(x, name):
        w = params[name + "_w"].astype(f32)
        b = params[name + "_b"].astype(f32)
        return x.astype(f32) @ w.T + b

    # Q activations: zero-pad, bf16 MXU operands (projected inside the kernel).
    qu = pad2(Q_user, nqp, ep).astype(jnp.bfloat16)
    qi = pad2(Q_item, nqp, ep).astype(jnp.bfloat16)

    # K/V projections hoisted out of the kernel: done once here in f32,
    # padded lane-dense, cast to bf16, and kept VMEM-resident across the grid.
    ku = pad2(linear(K_user, "W_k_user"), nkp, ep).astype(jnp.bfloat16)
    vu = pad2(linear(V_user, "W_v_user"), nkp, ep).astype(jnp.bfloat16)
    ki = pad2(linear(K_item, "W_k_item"), nkp, ep).astype(jnp.bfloat16)

    # q-side weights only, packed into one slab, 1/scale folded in.
    w_blocks, b_blocks = [], []
    for name in ("W_q_user", "W_q_item"):
        w = params[name + "_w"].astype(f32).T * inv_scale        # [in, out]
        b = params[name + "_b"].astype(f32) * inv_scale
        w_blocks.append(pad2(w, ep, ep))
        b_blocks.append(jnp.pad(b, (0, ep - e)))
    w_all = jnp.concatenate(w_blocks, axis=1).astype(jnp.bfloat16)  # [ep, 2ep]
    b_all = jnp.concatenate(b_blocks, axis=0).reshape(1, 2 * ep)    # f32

    # Resident additive key-padding mask shared by both softmaxes.
    mask = jnp.where(jnp.arange(nkp) < n_k, 0.0, -1e30
                     ).astype(f32).reshape(1, nkp)

    q_spec = pl.BlockSpec((bq, ep), lambda i: (i, 0))
    kv_spec = pl.BlockSpec((nkp, ep), lambda i: (0, 0))      # resident
    w_spec = pl.BlockSpec((ep, 2 * ep), lambda i: (0, 0))    # resident
    b_spec = pl.BlockSpec((1, 2 * ep), lambda i: (0, 0))     # resident
    mask_spec = pl.BlockSpec((1, nkp), lambda i: (0, 0))     # resident
    out_spec = pl.BlockSpec((bq, ep), lambda i: (i, 0))
    attn_spec = pl.BlockSpec((bq, nkp), lambda i: (i, 0))

    kernel = functools.partial(cd_attention_kernel, ep=ep, alpha=float(alpha))

    out_pad, attn_pad = pl.pallas_call(
        kernel,
        out_shape=(jax.ShapeDtypeStruct((nqp, ep), f32),
                   jax.ShapeDtypeStruct((nqp, nkp), attn_store_dtype)),
        grid_spec=pltpu.PrefetchScalarGridSpec(
            num_scalar_prefetch=0,
            grid=grid,
            in_specs=[q_spec, q_spec, kv_spec, kv_spec, kv_spec,
                      w_spec, b_spec, mask_spec],
            out_specs=(out_spec, attn_spec)),
        compiler_params=pltpu.CompilerParams(
            dimension_semantics=("parallel",),
            vmem_limit_bytes=_vmem_limit_bytes(bq, ep, nkp, attn_bytes, cap)),
    )(qu, qi, ku, vu, ki, w_all, b_all, mask)

    return out_pad[:n_q, :e], attn_pad[:n_q, :n_k].astype(f32)


def _init_params(key, embed_dim):
    """Deterministic synthetic parameters (PyTorch Linear layout [out, in])."""
    names = ["W_q_user", "W_k_user", "W_v_user", "W_q_item", "W_k_item"]
    params = {}
    bound = 1.0 / math.sqrt(embed_dim)
    for i, n in enumerate(names):
        kw, kb = jax.random.split(jax.random.fold_in(key, i))
        params[n + "_w"] = jax.random.uniform(
            kw, (embed_dim, embed_dim), jnp.float32, -bound, bound)
        params[n + "_b"] = jax.random.uniform(
            kb, (embed_dim,), jnp.float32, -bound, bound)
    return params


def _reference(Q_user, K_user, V_user, Q_item, K_item, params, alpha=0.9):
    e = Q_user.shape[1]
    scale = jnp.sqrt(jnp.float32(e))

    def lin(x, n):
        return x @ params[n + "_w"].T + params[n + "_b"]

    q_u, k_u, v_u = (lin(Q_user, "W_q_user"), lin(K_user, "W_k_user"),
                     lin(V_user, "W_v_user"))
    aw_u = jax.nn.softmax(q_u @ k_u.T / scale, axis=1)
    q_i, k_i = lin(Q_item, "W_q_item"), lin(K_item, "W_k_item")
    aw_i = jax.nn.softmax(q_i @ k_i.T / scale, axis=1)
    aw = alpha * aw_u + (1.0 - alpha) * aw_i
    return aw @ v_u, aw


if __name__ == "__main__":
    key = jax.random.PRNGKey(0)
    embed_dim = 32
    n_q, n_k = 8, 8   # target users / source users

    k1, k2, k3, k4, k5, kp = jax.random.split(key, 6)
    Q_user = jax.random.normal(k1, (n_q, embed_dim), jnp.float32)
    K_user = jax.random.normal(k2, (n_k, embed_dim), jnp.float32)
    V_user = jax.random.normal(k3, (n_k, embed_dim), jnp.float32)
    Q_item = jax.random.normal(k4, (n_q, embed_dim), jnp.float32)
    K_item = jax.random.normal(k5, (n_k, embed_dim), jnp.float32)

    params = _init_params(kp, embed_dim)

    out, attn = cd_user_item_attention(Q_user, K_user, V_user, Q_item, K_item,
                                       params, alpha=0.9)
    out = jax.block_until_ready(out)
    attn = jax.block_until_ready(attn)

    ref_out, ref_attn = _reference(Q_user, K_user, V_user, Q_item, K_item,
                                   params, alpha=0.9)
    # Tolerances vs the f32 reference: kernel uses bf16 MXU operands with f32
    # accumulation and stores the attention weights in bf16.
    assert out.shape == (n_q, embed_dim) and attn.shape == (n_q, n_k)
    assert jnp.allclose(attn, ref_attn, atol=1e-2, rtol=3e-2), (
        float(jnp.max(jnp.abs(attn - ref_attn))))
    assert jnp.allclose(out, ref_out, atol=3e-2, rtol=3e-2), (
        float(jnp.max(jnp.abs(out - ref_out))))
    # Exact-division softmax -> rows sum to 1 up to f32 rounding; the bf16
    # attention writeback quantization bounds the deviation by ~2e-3.
    assert jnp.allclose(jnp.sum(attn, axis=1), jnp.ones((n_q,)), atol=5e-3), (
        float(jnp.max(jnp.abs(jnp.sum(attn, axis=1) - 1.0))))

    print("KERNEL_OK")
</pallas_src>

<mosaic_0001>
module attributes {stable_mosaic.version = 11 : i64} {
  func.func @cd_attention_kernel(%arg0: i32, %arg1: memref<8x128xbf16, #tpu.memory_space<vmem>>, %arg2: memref<8x128xbf16, #tpu.memory_space<vmem>>, %arg3: memref<128x128xbf16, #tpu.memory_space<vmem>>, %arg4: memref<128x128xbf16, #tpu.memory_space<vmem>>, %arg5: memref<128x128xbf16, #tpu.memory_space<vmem>>, %arg6: memref<128x256xbf16, #tpu.memory_space<vmem>>, %arg7: memref<1x256xf32, #tpu.memory_space<vmem>>, %arg8: memref<1x128xf32, #tpu.memory_space<vmem>>, %arg9: memref<8x128xf32, #tpu.memory_space<vmem>>, %arg10: memref<8x128xbf16, #tpu.memory_space<vmem>>) attributes {dimension_semantics = [#tpu.dimension_semantics<parallel>], iteration_bounds = array<i64: 1>, scalar_prefetch = 0 : i64, scratch_operands = 0 : i64, tpu.core_type = #tpu.core_type<tc>, window_params = [{transform_indices = @transform_0, window_bounds = array<i64: 8, 128>}, {transform_indices = @transform_1, window_bounds = array<i64: 8, 128>}, {pipeline_mode = #tpu.pipeline_mode<synchronous>, transform_indices = @transform_2, window_bounds = array<i64: 128, 128>}, {pipeline_mode = #tpu.pipeline_mode<synchronous>, transform_indices = @transform_3, window_bounds = array<i64: 128, 128>}, {pipeline_mode = #tpu.pipeline_mode<synchronous>, transform_indices = @transform_4, window_bounds = array<i64: 128, 128>}, {pipeline_mode = #tpu.pipeline_mode<synchronous>, transform_indices = @transform_5, window_bounds = array<i64: 128, 256>}, {pipeline_mode = #tpu.pipeline_mode<synchronous>, transform_indices = @transform_6, window_bounds = array<i64: 1, 256>}, {pipeline_mode = #tpu.pipeline_mode<synchronous>, transform_indices = @transform_7, window_bounds = array<i64: 1, 128>}, {transform_indices = @transform_8, window_bounds = array<i64: 8, 128>}, {transform_indices = @transform_9, window_bounds = array<i64: 8, 128>}]} {
    %c0 = arith.constant 0 : index
    %c0_0 = arith.constant 0 : index
    %0 = vector.load %arg8[%c0, %c0_0] : memref<1x128xf32, #tpu.memory_space<vmem>>, vector<1x128xf32>
    %c0_1 = arith.constant 0 : index
    %c0_2 = arith.constant 0 : index
    %1 = vector.load %arg1[%c0_1, %c0_2] : memref<8x128xbf16, #tpu.memory_space<vmem>>, vector<8x128xbf16>
    %c0_3 = arith.constant 0 : index
    %c0_4 = arith.constant 0 : index
    %2 = vector.load %arg6[%c0_3, %c0_4] : memref<128x256xbf16, #tpu.memory_space<vmem>>, vector<128x128xbf16>
    %cst = arith.constant dense<0.000000e+00> : vector<8x128xf32>
    %3 = tpu.matmul %1, %2, %cst {dimension_numbers = #tpu.dot_dimension_numbers<[1], [0], [0], [1], [0, 0, 1, 1], [], []>} : vector<8x128xbf16>, vector<128x128xbf16>, vector<8x128xf32> -> vector<8x128xf32>
    %c0_5 = arith.constant 0 : index
    %c0_6 = arith.constant 0 : index
    %4 = vector.load %arg7[%c0_5, %c0_6] : memref<1x256xf32, #tpu.memory_space<vmem>>, vector<1x128xf32>
    %5 = vector.broadcast %4 : vector<1x128xf32> to vector<8x128xf32>
    %6 = arith.addf %3, %5 : vector<8x128xf32>
    %7 = arith.truncf %6 : vector<8x128xf32> to vector<8x128xbf16>
    %c0_7 = arith.constant 0 : index
    %c0_8 = arith.constant 0 : index
    %8 = vector.load %arg2[%c0_7, %c0_8] : memref<8x128xbf16, #tpu.memory_space<vmem>>, vector<8x128xbf16>
    %c0_9 = arith.constant 0 : index
    %c128 = arith.constant 128 : index
    %9 = vector.load %arg6[%c0_9, %c128] : memref<128x256xbf16, #tpu.memory_space<vmem>>, vector<128x128xbf16>
    %cst_10 = arith.constant dense<0.000000e+00> : vector<8x128xf32>
    %10 = tpu.matmul %8, %9, %cst_10 {dimension_numbers = #tpu.dot_dimension_numbers<[1], [0], [0], [1], [0, 0, 1, 1], [], []>} : vector<8x128xbf16>, vector<128x128xbf16>, vector<8x128xf32> -> vector<8x128xf32>
    %c0_11 = arith.constant 0 : index
    %c128_12 = arith.constant 128 : index
    %11 = vector.load %arg7[%c0_11, %c128_12] : memref<1x256xf32, #tpu.memory_space<vmem>>, vector<1x128xf32>
    %12 = vector.broadcast %11 : vector<1x128xf32> to vector<8x128xf32>
    %13 = arith.addf %10, %12 : vector<8x128xf32>
    %14 = arith.truncf %13 : vector<8x128xf32> to vector<8x128xbf16>
    %c0_13 = arith.constant 0 : index
    %c0_14 = arith.constant 0 : index
    %15 = vector.load %arg3[%c0_13, %c0_14] : memref<128x128xbf16, #tpu.memory_space<vmem>>, vector<128x128xbf16>
    %cst_15 = arith.constant dense<0.000000e+00> : vector<8x128xf32>
    %16 = tpu.matmul %7, %15, %cst_15 {dimension_numbers = #tpu.dot_dimension_numbers<[1], [1], [0], [0], [0, 0, 1, 0], [], []>} : vector<8x128xbf16>, vector<128x128xbf16>, vector<8x128xf32> -> vector<8x128xf32>
    %17 = vector.broadcast %0 : vector<1x128xf32> to vector<8x128xf32>
    %18 = arith.addf %16, %17 : vector<8x128xf32>
    %c0_16 = arith.constant 0 : index
    %c0_17 = arith.constant 0 : index
    %19 = vector.load %arg5[%c0_16, %c0_17] : memref<128x128xbf16, #tpu.memory_space<vmem>>, vector<128x128xbf16>
    %cst_18 = arith.constant dense<0.000000e+00> : vector<8x128xf32>
    %20 = tpu.matmul %14, %19, %cst_18 {dimension_numbers = #tpu.dot_dimension_numbers<[1], [1], [0], [0], [0, 0, 1, 0], [], []>} : vector<8x128xbf16>, vector<128x128xbf16>, vector<8x128xf32> -> vector<8x128xf32>
    %21 = vector.broadcast %0 : vector<1x128xf32> to vector<8x128xf32>
    %22 = arith.addf %20, %21 : vector<8x128xf32>
    %cst_19 = arith.constant dense<0xFF800000> : vector<8xf32>
    %23 = vector.multi_reduction <maximumf>, %18, %cst_19 [1] : vector<8x128xf32> to vector<8xf32>
    %24 = vector.shape_cast %23 : vector<8xf32> to vector<8x1xf32>
    %25 = vector.broadcast %24 : vector<8x1xf32> to vector<8x128xf32>
    %26 = arith.subf %18, %25 : vector<8x128xf32>
    %27 = math.exp %26 : vector<8x128xf32>
    %cst_20 = arith.constant dense<0.000000e+00> : vector<8xf32>
    %28 = vector.multi_reduction <add>, %27, %cst_20 [1] : vector<8x128xf32> to vector<8xf32>
    %29 = vector.shape_cast %28 : vector<8xf32> to vector<8x1xf32>
    %30 = vector.broadcast %29 : vector<8x1xf32> to vector<8x128xf32>
    %31 = arith.divf %27, %30 : vector<8x128xf32>
    %cst_21 = arith.constant dense<0xFF800000> : vector<8xf32>
    %32 = vector.multi_reduction <maximumf>, %22, %cst_21 [1] : vector<8x128xf32> to vector<8xf32>
    %33 = vector.shape_cast %32 : vector<8xf32> to vector<8x1xf32>
    %34 = vector.broadcast %33 : vector<8x1xf32> to vector<8x128xf32>
    %35 = arith.subf %22, %34 : vector<8x128xf32>
    %36 = math.exp %35 : vector<8x128xf32>
    %cst_22 = arith.constant dense<0.000000e+00> : vector<8xf32>
    %37 = vector.multi_reduction <add>, %36, %cst_22 [1] : vector<8x128xf32> to vector<8xf32>
    %38 = vector.shape_cast %37 : vector<8xf32> to vector<8x1xf32>
    %39 = vector.broadcast %38 : vector<8x1xf32> to vector<8x128xf32>
    %40 = arith.divf %36, %39 : vector<8x128xf32>
    %cst_23 = arith.constant 0.899999976 : f32
    %41 = vector.broadcast %cst_23 : f32 to vector<8x128xf32>
    %42 = arith.mulf %41, %31 : vector<8x128xf32>
    %cst_24 = arith.constant 1.000000e-01 : f32
    %43 = vector.broadcast %cst_24 : f32 to vector<8x128xf32>
    %44 = arith.mulf %43, %40 : vector<8x128xf32>
    %45 = arith.addf %42, %44 : vector<8x128xf32>
    %46 = arith.truncf %45 : vector<8x128xf32> to vector<8x128xbf16>
    %c0_25 = arith.constant 0 : index
    %c0_26 = arith.constant 0 : index
    %47 = vector.load %arg4[%c0_25, %c0_26] : memref<128x128xbf16, #tpu.memory_space<vmem>>, vector<128x128xbf16>
    %cst_27 = arith.constant dense<0.000000e+00> : vector<8x128xf32>
    %48 = tpu.matmul %46, %47, %cst_27 {dimension_numbers = #tpu.dot_dimension_numbers<[1], [0], [0], [1], [0, 0, 1, 1], [], []>} : vector<8x128xbf16>, vector<128x128xbf16>, vector<8x128xf32> -> vector<8x128xf32>
    %c0_28 = arith.constant 0 : index
    %c0_29 = arith.constant 0 : index
    %49 = vector.load %arg9[%c0_28, %c0_29] : memref<8x128xf32, #tpu.memory_space<vmem>>, vector<8x128xf32>
    tpu.vector_store %arg9[%c0_28, %c0_29], %48 {strides = array<i32>} : memref<8x128xf32, #tpu.memory_space<vmem>>, vector<8x128xf32>,
    %50 = arith.truncf %45 : vector<8x128xf32> to vector<8x128xbf16>
    %c0_30 = arith.constant 0 : index
    %c0_31 = arith.constant 0 : index
    %51 = vector.load %arg10[%c0_30, %c0_31] : memref<8x128xbf16, #tpu.memory_space<vmem>>, vector<8x128xbf16>
    tpu.vector_store %arg10[%c0_30, %c0_31], %50 {strides = array<i32>} : memref<8x128xbf16, #tpu.memory_space<vmem>>, vector<8x128xbf16>,
    return
  }
  func.func @transform_0(%arg0: i32) -> (i32, i32) {
    %c0_i32 = arith.constant 0 : i32
    %c0_i32_0 = arith.constant 0 : i32
    return %arg0, %c0_i32 : i32, i32
  }
  func.func @transform_1(%arg0: i32) -> (i32, i32) {
    %c0_i32 = arith.constant 0 : i32
    %c0_i32_0 = arith.constant 0 : i32
    return %arg0, %c0_i32 : i32, i32
  }
  func.func @transform_2(%arg0: i32) -> (i32, i32) {
    %c0_i32 = arith.constant 0 : i32
    %c0_i32_0 = arith.constant 0 : i32
    %c0_i32_1 = arith.constant 0 : i32
    return %c0_i32, %c0_i32_0 : i32, i32
  }
  func.func @transform_3(%arg0: i32) -> (i32, i32) {
    %c0_i32 = arith.constant 0 : i32
    %c0_i32_0 = arith.constant 0 : i32
    %c0_i32_1 = arith.constant 0 : i32
    return %c0_i32, %c0_i32_0 : i32, i32
  }
  func.func @transform_4(%arg0: i32) -> (i32, i32) {
    %c0_i32 = arith.constant 0 : i32
    %c0_i32_0 = arith.constant 0 : i32
    %c0_i32_1 = arith.constant 0 : i32
    return %c0_i32, %c0_i32_0 : i32, i32
  }
  func.func @transform_5(%arg0: i32) -> (i32, i32) {
    %c0_i32 = arith.constant 0 : i32
    %c0_i32_0 = arith.constant 0 : i32
    %c0_i32_1 = arith.constant 0 : i32
    return %c0_i32, %c0_i32_0 : i32, i32
  }
  func.func @transform_6(%arg0: i32) -> (i32, i32) {
    %c0_i32 = arith.constant 0 : i32
    %c0_i32_0 = arith.constant 0 : i32
    %c0_i32_1 = arith.constant 0 : i32
    return %c0_i32, %c0_i32_0 : i32, i32
  }
  func.func @transform_7(%arg0: i32) -> (i32, i32) {
    %c0_i32 = arith.constant 0 : i32
    %c0_i32_0 = arith.constant 0 : i32
    %c0_i32_1 = arith.constant 0 : i32
    return %c0_i32, %c0_i32_0 : i32, i32
  }
  func.func @transform_8(%arg0: i32) -> (i32, i32) {
    %c0_i32 = arith.constant 0 : i32
    %c0_i32_0 = arith.constant 0 : i32
    return %arg0, %c0_i32 : i32, i32
  }
  func.func @transform_9(%arg0: i32) -> (i32, i32) {
    %c0_i32 = arith.constant 0 : i32
    %c0_i32_0 = arith.constant 0 : i32
    return %arg0, %c0_i32 : i32, i32
  }
}

</mosaic_0001>

<llo_original>
// kernel: tpu_custom_call.1
$region0: #{tpu_custom_call.1}
  #allocation0 [shape = 'u32[]', space=smem, size = 0x4, offset = 0x4, fixed_abs, tag = 'smem constant byte address 0x4 - core index']
  #allocation1 [shape = 'u32[144,128]{1,0:T(1,128)}', space=vmem, size = 0x12000, scoped, tag = 'internal scratch']
  %s0 = inlined_call_operand.hbm [shape: bf16[8,128], index: 0, kind: input, shape index: {}]
  %s1 = inlined_call_operand.hbm [shape: bf16[8,128], index: 1, kind: input, shape index: {}]
  %s2 = inlined_call_operand.hbm [shape: bf16[128,128], index: 2, kind: input, shape index: {}]
  %s3 = inlined_call_operand.hbm [shape: bf16[128,128], index: 3, kind: input, shape index: {}]
  %s4 = inlined_call_operand.hbm [shape: bf16[128,128], index: 4, kind: input, shape index: {}]
  %s5 = inlined_call_operand.hbm [shape: bf16[128,256], index: 5, kind: input, shape index: {}]
  %s6 = inlined_call_operand.vmem [shape: f32[1,256], index: 6, kind: input, shape index: {}]
  %s7 = inlined_call_operand.vmem [shape: f32[1,128], index: 7, kind: input, shape index: {}]
  %s8 = inlined_call_operand.hbm [shape: f32[8,128], index: 8, kind: output, shape index: {0}]
  %s9 = inlined_call_operand.hbm [shape: bf16[8,128], index: 9, kind: output, shape index: {1}]
  %10 = xla_tuple %s8, %s9
  %s11 = sld [smem:[#allocation0]]
  $region74: #{tpu_custom_call.1} parent=0
    _
  %s13 = ssub.s32 1, %s11
  %s14 = scalar_select 0, %s13, %s11
  $region1: #{tpu_custom_call.1} parent=0
    #allocation2 [shape = 'u8[2048]{0}', space=vmem, size = 0x800, scoped, tag = 'input window, operand 0, single buffered']
    #allocation3 [shape = 's32[1]{0}', space=sflag, size = 0x4, scoped, tag = 'scoped memory for tpu_custom_call.1']
    #allocation4 [shape = 's32[1]{0}', space=sflag, size = 0x4, scoped, tag = 'scoped memory for tpu_custom_call.1']
    #allocation5 [shape = 'u8[2048]{0}', space=vmem, size = 0x800, scoped, tag = 'input window, operand 1, single buffered']
    #allocation6 [shape = 's32[1]{0}', space=sflag, size = 0x4, scoped, tag = 'scoped memory for tpu_custom_call.1']
    #allocation7 [shape = 'u8[32768]{0}', space=vmem, size = 0x8000, scoped, tag = 'input window, operand 2, single buffered']
    #allocation8 [shape = 'u8[32768]{0}', space=vmem, size = 0x8000, scoped, tag = 'input window, operand 3, single buffered']
    #allocation9 [shape = 's32[1]{0}', space=sflag, size = 0x4, scoped, tag = 'scoped memory for tpu_custom_call.1']
    #allocation10 [shape = 'u8[32768]{0}', space=vmem, size = 0x8000, scoped, tag = 'input window, operand 4, single buffered']
    #allocation11 [shape = 'u8[65536]{0}', space=vmem, size = 0x10000, scoped, tag = 'input window, operand 5, single buffered']
    #allocation12 [shape = 's32[1]{0}', space=sflag, size = 0x4, scoped, tag = 'scoped memory for tpu_custom_call.1']
    #allocation13 [shape = 'u8[4096]{0}', space=vmem, size = 0x1000, scoped, tag = 'output window, operand 0, single buffered']
    #allocation14 [shape = 'u8[2048]{0}', space=vmem, size = 0x800, scoped, tag = 'output window, operand 1, single buffered']
    #allocation15 [shape = 's32[1]{0}', space=sflag, size = 0x4, scoped, tag = 'scoped memory for tpu_custom_call.1']
    %15 = vsyncpa [#allocation3], 0
    %16 = vsyncpa [#allocation6], 0
    %17 = vsyncpa [#allocation9], 0
    %18 = vsyncpa [#allocation12], 0
    %19 = vsyncpa [#allocation4], 0
    %20 = vsyncpa [#allocation15], 0
    // Predicated region
    $region2: #{tpu_custom_call.1} parent=1 // pred_check
      _
    $region3: #{tpu_custom_call.1} parent=1 // pred_check_branch
      %22 = sbr.rel (0) target = $region5
    $region4: #{tpu_custom_call.1} parent=1 // pred_region
      %s24 = ssub.s32 64, 64
      %25 = vsyncadd [#allocation3], %s24
      %s27 = sshll.u32 [#allocation2], 4
      %s28 = int_to_ptr.vmem [resolvable:$true] %s27
      %30 = dma.hbm_to_vmem [thread:$0]  %s0, 64, %s28, [#allocation3]
    $region5: #{tpu_custom_call.1} parent=1 // pred_fallthru
      _
    // Predicated region
    $region6: #{tpu_custom_call.1} parent=1 // pred_check
      _
    $region7: #{tpu_custom_call.1} parent=1 // pred_check_branch
      %32 = sbr.rel (0) target = $region9
    $region8: #{tpu_custom_call.1} parent=1 // pred_region
      %s34 = ssub.s32 64, 64
      %35 = vsyncadd [#allocation6], %s34
      %s37 = sshll.u32 [#allocation5], 4
      %s38 = int_to_ptr.vmem [resolvable:$true] %s37
      %40 = dma.hbm_to_vmem [thread:$0]  %s1, 64, %s38, [#allocation6]
    $region9: #{tpu_custom_call.1} parent=1 // pred_fallthru
      _
    // Predicated region
    $region10: #{tpu_custom_call.1} parent=1 // pred_check
      _
    $region11: #{tpu_custom_call.1} parent=1 // pred_check_branch
      %42 = sbr.rel (0) target = $region13
    $region12: #{tpu_custom_call.1} parent=1 // pred_region
      %s44 = ssub.s32 1024, 1024
      %45 = vsyncadd [#allocation6], %s44
      %s46 = sshll.u32 [#allocation7], 4
      %s47 = int_to_ptr.vmem [resolvable:$true] %s46
      %52 = dma.hbm_to_vmem [thread:$0]  %s2, 1024, %s47, [#allocation6], 64, 64, 4
    $region13: #{tpu_custom_call.1} parent=1 // pred_fallthru
      _
    // Predicated region
    $region14: #{tpu_custom_call.1} parent=1 // pred_check
      _
    $region15: #{tpu_custom_call.1} parent=1 // pred_check_branch
      %54 = sbr.rel (0) target = $region17
    $region16: #{tpu_custom_call.1} parent=1 // pred_region
      %s56 = ssub.s32 1024, 1024
      %57 = vsyncadd [#allocation9], %s56
      %s58 = sshll.u32 [#allocation8], 4
      %s59 = int_to_ptr.vmem [resolvable:$true] %s58
      %64 = dma.hbm_to_vmem [thread:$0]  %s3, 1024, %s59, [#allocation9], 64, 64, 4
    $region17: #{tpu_custom_call.1} parent=1 // pred_fallthru
      _
    // Predicated region
    $region18: #{tpu_custom_call.1} parent=1 // pred_check
      _
    $region19: #{tpu_custom_call.1} parent=1 // pred_check_branch
      %66 = sbr.rel (0) target = $region21
    $region20: #{tpu_custom_call.1} parent=1 // pred_region
      %s68 = ssub.s32 1024, 1024
      %69 = vsyncadd [#allocation9], %s68
      %s70 = sshll.u32 [#allocation10], 4
      %s71 = int_to_ptr.vmem [resolvable:$true] %s70
      %76 = dma.hbm_to_vmem [thread:$0]  %s4, 1024, %s71, [#allocation9], 64, 64, 4
    $region21: #{tpu_custom_call.1} parent=1 // pred_fallthru
      _
    // Predicated region
    $region22: #{tpu_custom_call.1} parent=1 // pred_check
      _
    $region23: #{tpu_custom_call.1} parent=1 // pred_check_branch
      %78 = sbr.rel (0) target = $region25
    $region24: #{tpu_custom_call.1} parent=1 // pred_region
      %s80 = ssub.s32 2048, 2048
      %81 = vsyncadd [#allocation12], %s80
      %s82 = sshll.u32 [#allocation11], 4
      %s83 = int_to_ptr.vmem [resolvable:$true] %s82
      %88 = dma.hbm_to_vmem [thread:$0]  %s5, 2048, %s83, [#allocation12], 128, 128, 8
    $region25: #{tpu_custom_call.1} parent=1 // pred_fallthru
      _
    // Predicated region
    $region26: #{tpu_custom_call.1} parent=1 // pred_check
      _
    $region27: #{tpu_custom_call.1} parent=1 // pred_check_branch
      %90 = sbr.rel (0) target = $region29
    $region28: #{tpu_custom_call.1} parent=1 // pred_region
      _
    $region29: #{tpu_custom_call.1} parent=1 // pred_fallthru
      _
    // Predicated region
    $region30: #{tpu_custom_call.1} parent=1 // pred_check
      _
    $region31: #{tpu_custom_call.1} parent=1 // pred_check_branch
      %92 = sbr.rel (0) target = $region33
    $region32: #{tpu_custom_call.1} parent=1 // pred_region
      _
    $region33: #{tpu_custom_call.1} parent=1 // pred_fallthru
      _
    // Predicated region
    $region34: #{tpu_custom_call.1} parent=1 // pred_check
      _
    $region35: #{tpu_custom_call.1} parent=1 // pred_check_branch
      %94 = sbr.rel (0) target = $region37
    $region36: #{tpu_custom_call.1} parent=1 // pred_region
      %95 = dma.done [#allocation3], 64
    $region37: #{tpu_custom_call.1} parent=1 // pred_fallthru
      _
    // Predicated region
    $region38: #{tpu_custom_call.1} parent=1 // pred_check
      _
    $region39: #{tpu_custom_call.1} parent=1 // pred_check_branch
      %97 = sbr.rel (0) target = $region41
    $region40: #{tpu_custom_call.1} parent=1 // pred_region
      %98 = dma.done [#allocation6], 64
    $region41: #{tpu_custom_call.1} parent=1 // pred_fallthru
      _
    // Predicated region
    $region42: #{tpu_custom_call.1} parent=1 // pred_check
      _
    $region43: #{tpu_custom_call.1} parent=1 // pred_check_branch
      %100 = sbr.rel (0) target = $region45
    $region44: #{tpu_custom_call.1} parent=1 // pred_region
      %101 = dma.done [#allocation6], 1024
    $region45: #{tpu_custom_call.1} parent=1 // pred_fallthru
      _
    // Predicated region
    $region46: #{tpu_custom_call.1} parent=1 // pred_check
      _
    $region47: #{tpu_custom_call.1} parent=1 // pred_check_branch
      %103 = sbr.rel (0) target = $region49
    $region48: #{tpu_custom_call.1} parent=1 // pred_region
      %104 = dma.done [#allocation9], 1024
    $region49: #{tpu_custom_call.1} parent=1 // pred_fallthru
      _
    // Predicated region
    $region50: #{tpu_custom_call.1} parent=1 // pred_check
      _
    $region51: #{tpu_custom_call.1} parent=1 // pred_check_branch
      %106 = sbr.rel (0) target = $region53
    $region52: #{tpu_custom_call.1} parent=1 // pred_region
      %107 = dma.done [#allocation9], 1024
    $region53: #{tpu_custom_call.1} parent=1 // pred_fallthru
      _
    // Predicated region
    $region54: #{tpu_custom_call.1} parent=1 // pred_check
      _
    $region55: #{tpu_custom_call.1} parent=1 // pred_check_branch
      %109 = sbr.rel (0) target = $region57
    $region56: #{tpu_custom_call.1} parent=1 // pred_region
      %110 = dma.done [#allocation12], 2048
    $region57: #{tpu_custom_call.1} parent=1 // pred_fallthru
      _
    %v112 = vld [vmem:[%s7] sm:$0x1]
    %v113 = vld [vmem:[#allocation2] sm:$0xf]
    %v114 = vld [vmem:[#allocation11] sm:$0xf]
    %v115 = vld [vmem:[#allocation11 + $0x8] sm:$0xf]
    %v116 = vld [vmem:[#allocation11 + $0x10] sm:$0xf]
    %v117 = vld [vmem:[#allocation11 + $0x18] sm:$0xf]
    %v118 = vld [vmem:[#allocation11 + $0x20] sm:$0xf]
    %v119 = vld [vmem:[#allocation11 + $0x28] sm:$0xf]
    %v120 = vld [vmem:[#allocation11 + $0x30] sm:$0xf]
    %v121 = vld [vmem:[#allocation11 + $0x38] sm:$0xf]
    %v122 = vld [vmem:[#allocation11 + $0x40] sm:$0xf]
    %v123 = vld [vmem:[#allocation11 + $0x48] sm:$0xf]
    %v124 = vld [vmem:[#allocation11 + $0x50] sm:$0xf]
    %v125 = vld [vmem:[#allocation11 + $0x58] sm:$0xf]
    %v126 = vld [vmem:[#allocation11 + $0x60] sm:$0xf]
    %v127 = vld [vmem:[#allocation11 + $0x68] sm:$0xf]
    %v128 = vld [vmem:[#allocation11 + $0x70] sm:$0xf]
    %v129 = vld [vmem:[#allocation11 + $0x78] sm:$0xf]
    %v130 = vld [vmem:[%s6] sm:$0x1]
    %v132 = vlaneseq
    %v133 = vshrl.u32 %v132, 7
    %v134 = vsub.s32 0, %v133
    %v135 = vrot.slane %v130, %v134
    %v153 = vunpack.c.l.b16 %v114
    %v154 = vunpack.c.l.b16 %v115
    %v155 = vunpack.c.l.b16 %v116
    %v156 = vunpack.c.l.b16 %v117
    %v157 = vunpack.c.l.b16 %v118
    %v158 = vunpack.c.l.b16 %v119
    %v159 = vunpack.c.l.b16 %v120
    %v160 = vunpack.c.l.b16 %v121
    %v161 = vunpack.c.l.b16 %v122
    %v162 = vunpack.c.l.b16 %v123
    %v163 = vunpack.c.l.b16 %v124
    %v164 = vunpack.c.l.b16 %v125
    %v165 = vunpack.c.l.b16 %v126
    %v166 = vunpack.c.l.b16 %v127
    %v167 = vunpack.c.l.b16 %v128
    %v168 = vunpack.c.l.b16 %v129
    %v169 = vpack.c.b16 %v154, %v153
    %v170 = vpack.c.b16 %v156, %v155
    %v171 = vpack.c.b16 %v158, %v157
    %v172 = vpack.c.b16 %v160, %v159
    %v173 = vpack.c.b16 %v162, %v161
    %v174 = vpack.c.b16 %v164, %v163
    %v175 = vpack.c.b16 %v166, %v165
    %v176 = vpack.c.b16 %v168, %v167
    %185 = vmatprep.subr.bf16.mxu0 0
    %186 = vmatpush1.bf16.msra.mxu0 %v169
    %187 = vmatprep.subr.bf16.mxu0 0
    %188 = vmatpush1.bf16.msra.mxu0 %v170
    %189 = vmatprep.subr.bf16.mxu0 0
    %190 = vmatpush1.bf16.msra.mxu0 %v171
    %191 = vmatprep.subr.bf16.mxu0 0
    %192 = vmatpush1.bf16.msra.mxu0 %v172
    %193 = vmatprep.subr.bf16.mxu0 0
    %194 = vmatpush1.bf16.msra.mxu0 %v173
    %195 = vmatprep.subr.bf16.mxu0 0
    %196 = vmatpush1.bf16.msra.mxu0 %v174
    %197 = vmatprep.subr.bf16.mxu0 0
    %198 = vmatpush1.bf16.msra.mxu0 %v175
    %199 = vmatprep.subr.bf16.mxu0 0
    %200 = vmatpush1.bf16.msra.mxu0 %v176
    %201 = vmatprep.subr.bf16.mxu0 0
    %202 = vmatpush1.bf16.msra.mxu0 0
    %203 = vmatprep.subr.bf16.mxu0 0
    %204 = vmatpush1.bf16.msra.mxu0 0
    %205 = vmatprep.subr.bf16.mxu0 0
    %206 = vmatpush1.bf16.msra.mxu0 0
    %207 = vmatprep.subr.bf16.mxu0 0
    %208 = vmatpush1.bf16.msra.mxu0 0
    %209 = vmatprep.subr.bf16.mxu0 0
    %210 = vmatpush1.bf16.msra.mxu0 0
    %211 = vmatprep.subr.bf16.mxu0 0
    %212 = vmatpush1.bf16.msra.mxu0 0
    %213 = vmatprep.subr.bf16.mxu0 0
    %214 = vmatpush1.bf16.msra.mxu0 0
    %215 = vmatprep.subr.bf16.mxu0 0
    %216 = vmatpush1.bf16.msra.mxu0 0
    %217 = vmatprep.mubr.bf16.mxu0 0
    %218 = vmatmul.mubr.bf16.gmra.mrb[0].mxu0 %v113
    %v219 = vpop.f32.mrb[0].mxu0
    %v220 = vadd.f32 %v135, %v219
    %v221 = vpop.f32.mrb[0].mxu0
    %v222 = vpop.f32.mrb[0].mxu0
    %v223 = vpop.f32.mrb[0].mxu0
    %224 = vdwg.mxu0
    %v225 = vpack.c.bf16 %v220, %v220
    %v226 = vld [vmem:[#allocation5] sm:$0xf]
    %v227 = vld [vmem:[#allocation11 + $0x4] sm:$0xf]
    %v228 = vld [vmem:[#allocation11 + $0xc] sm:$0xf]
    %v229 = vld [vmem:[#allocation11 + $0x14] sm:$0xf]
    %v230 = vld [vmem:[#allocation11 + $0x1c] sm:$0xf]
    %v231 = vld [vmem:[#allocation11 + $0x24] sm:$0xf]
    %v232 = vld [vmem:[#allocation11 + $0x2c] sm:$0xf]
    %v233 = vld [vmem:[#allocation11 + $0x34] sm:$0xf]
    %v234 = vld [vmem:[#allocation11 + $0x3c] sm:$0xf]
    %v235 = vld [vmem:[#allocation11 + $0x44] sm:$0xf]
    %v236 = vld [vmem:[#allocation11 + $0x4c] sm:$0xf]
    %v237 = vld [vmem:[#allocation11 + $0x54] sm:$0xf]
    %v238 = vld [vmem:[#allocation11 + $0x5c] sm:$0xf]
    %v239 = vld [vmem:[#allocation11 + $0x64] sm:$0xf]
    %v240 = vld [vmem:[#allocation11 + $0x6c] sm:$0xf]
    %v241 = vld [vmem:[#allocation11 + $0x74] sm:$0xf]
    %v242 = vld [vmem:[#allocation11 + $0x7c] sm:$0xf]
    %v243 = vld [vmem:[%s6 + $0x1] sm:$0x1]
    %v245 = vlaneseq
    %v246 = vshrl.u32 %v245, 7
    %v247 = vsub.s32 0, %v246
    %v248 = vrot.slane %v243, %v247
    %v266 = vunpack.c.l.b16 %v227
    %v267 = vunpack.c.l.b16 %v228
    %v268 = vunpack.c.l.b16 %v229
    %v269 = vunpack.c.l.b16 %v230
    %v270 = vunpack.c.l.b16 %v231
    %v271 = vunpack.c.l.b16 %v232
    %v272 = vunpack.c.l.b16 %v233
    %v273 = vunpack.c.l.b16 %v234
    %v274 = vunpack.c.l.b16 %v235
    %v275 = vunpack.c.l.b16 %v236
    %v276 = vunpack.c.l.b16 %v237
    %v277 = vunpack.c.l.b16 %v238
    %v278 = vunpack.c.l.b16 %v239
    %v279 = vunpack.c.l.b16 %v240
    %v280 = vunpack.c.l.b16 %v241
    %v281 = vunpack.c.l.b16 %v242
    %v282 = vpack.c.b16 %v267, %v266
    %v283 = vpack.c.b16 %v269, %v268
    %v284 = vpack.c.b16 %v271, %v270
    %v285 = vpack.c.b16 %v273, %v272
    %v286 = vpack.c.b16 %v275, %v274
    %v287 = vpack.c.b16 %v277, %v276
    %v288 = vpack.c.b16 %v279, %v278
    %v289 = vpack.c.b16 %v281, %v280
    %298 = vmatprep.subr.bf16.mxu0 0
    %299 = vmatpush1.bf16.msra.mxu0 %v282
    %300 = vmatprep.subr.bf16.mxu0 0
    %301 = vmatpush1.bf16.msra.mxu0 %v283
    %302 = vmatprep.subr.bf16.mxu0 0
    %303 = vmatpush1.bf16.msra.mxu0 %v284
    %304 = vmatprep.subr.bf16.mxu0 0
    %305 = vmatpush1.bf16.msra.mxu0 %v285
    %306 = vmatprep.subr.bf16.mxu0 0
    %307 = vmatpush1.bf16.msra.mxu0 %v286
    %308 = vmatprep.subr.bf16.mxu0 0
    %309 = vmatpush1.bf16.msra.mxu0 %v287
    %310 = vmatprep.subr.bf16.mxu0 0
    %311 = vmatpush1.bf16.msra.mxu0 %v288
    %312 = vmatprep.subr.bf16.mxu0 0
    %313 = vmatpush1.bf16.msra.mxu0 %v289
    %314 = vmatprep.subr.bf16.mxu0 0
    %315 = vmatpush1.bf16.msra.mxu0 0
    %316 = vmatprep.subr.bf16.mxu0 0
    %317 = vmatpush1.bf16.msra.mxu0 0
    %318 = vmatprep.subr.bf16.mxu0 0
    %319 = vmatpush1.bf16.msra.mxu0 0
    %320 = vmatprep.subr.bf16.mxu0 0
    %321 = vmatpush1.bf16.msra.mxu0 0
    %322 = vmatprep.subr.bf16.mxu0 0
    %323 = vmatpush1.bf16.msra.mxu0 0
    %324 = vmatprep.subr.bf16.mxu0 0
    %325 = vmatpush1.bf16.msra.mxu0 0
    %326 = vmatprep.subr.bf16.mxu0 0
    %327 = vmatpush1.bf16.msra.mxu0 0
    %328 = vmatprep.subr.bf16.mxu0 0
    %329 = vmatpush1.bf16.msra.mxu0 0
    %330 = vmatprep.mubr.bf16.mxu0 0
    %331 = vmatmul.mubr.bf16.gmra.mrb[0].mxu0 %v226
    %v332 = vpop.f32.mrb[0].mxu0
    %v333 = vadd.f32 %v248, %v332
    %v334 = vpop.f32.mrb[0].mxu0
    %v335 = vpop.f32.mrb[0].mxu0
    %v336 = vpop.f32.mrb[0].mxu0
    %337 = vdwg.mxu0
    %v338 = vpack.c.bf16 %v333, %v333
    %v339 = vld [vmem:[#allocation7] sm:$0xf]
    %v340 = vld [vmem:[#allocation7 + $0x4] sm:$0xf]
    %v341 = vld [vmem:[#allocation7 + $0x8] sm:$0xf]
    %v342 = vld [vmem:[#allocation7 + $0xc] sm:$0xf]
    %v343 = vld [vmem:[#allocation7 + $0x10] sm:$0xf]
    %v344 = vld [vmem:[#allocation7 + $0x14] sm:$0xf]
    %v345 = vld [vmem:[#allocation7 + $0x18] sm:$0xf]
    %v346 = vld [vmem:[#allocation7 + $0x1c] sm:$0xf]
    %v347 = vld [vmem:[#allocation7 + $0x20] sm:$0xf]
    %v348 = vld [vmem:[#allocation7 + $0x24] sm:$0xf]
    %v349 = vld [vmem:[#allocation7 + $0x28] sm:$0xf]
    %v350 = vld [vmem:[#allocation7 + $0x2c] sm:$0xf]
    %v351 = vld [vmem:[#allocation7 + $0x30] sm:$0xf]
    %v352 = vld [vmem:[#allocation7 + $0x34] sm:$0xf]
    %v353 = vld [vmem:[#allocation7 + $0x38] sm:$0xf]
    %v354 = vld [vmem:[#allocation7 + $0x3c] sm:$0xf]
    %v356 = vlaneseq
    %v357 = vshrl.u32 %v356, 7
    %v358 = vsub.s32 0, %v357
    %v359 = vrot.slane %v112, %v358
    %v377 = vunpack.c.l.b16 %v339
    %v378 = vunpack.c.l.b16 %v340
    %v379 = vunpack.c.l.b16 %v341
    %v380 = vunpack.c.l.b16 %v342
    %v381 = vunpack.c.l.b16 %v343
    %v382 = vunpack.c.l.b16 %v344
    %v383 = vunpack.c.l.b16 %v345
    %v384 = vunpack.c.l.b16 %v346
    %v385 = vunpack.c.l.b16 %v347
    %v386 = vunpack.c.l.b16 %v348
    %v387 = vunpack.c.l.b16 %v349
    %v388 = vunpack.c.l.b16 %v350
    %v389 = vunpack.c.l.b16 %v351
    %v390 = vunpack.c.l.b16 %v352
    %v391 = vunpack.c.l.b16 %v353
    %v392 = vunpack.c.l.b16 %v354
    %v393 = vpack.c.b16 %v378, %v377
    %v394 = vpack.c.b16 %v380, %v379
    %v395 = vpack.c.b16 %v382, %v381
    %v396 = vpack.c.b16 %v384, %v383
    %v397 = vpack.c.b16 %v386, %v385
    %v398 = vpack.c.b16 %v388, %v387
    %v399 = vpack.c.b16 %v390, %v389
    %v400 = vpack.c.b16 %v392, %v391
    %409 = vmatprep.subr.bf16.mxu0 0
    %410 = vmatpush1.bf16.xpose.msra.mxu0 %v393
    %411 = vmatprep.subr.bf16.mxu0 0
    %412 = vmatpush1.bf16.xpose.msra.mxu0 %v394
    %413 = vmatprep.subr.bf16.mxu0 0
    %414 = vmatpush1.bf16.xpose.msra.mxu0 %v395
    %415 = vmatprep.subr.bf16.mxu0 0
    %416 = vmatpush1.bf16.xpose.msra.mxu0 %v396
    %417 = vmatprep.subr.bf16.mxu0 0
    %418 = vmatpush1.bf16.xpose.msra.mxu0 %v397
    %419 = vmatprep.subr.bf16.mxu0 0
    %420 = vmatpush1.bf16.xpose.msra.mxu0 %v398
    %421 = vmatprep.subr.bf16.mxu0 0
    %422 = vmatpush1.bf16.xpose.msra.mxu0 %v399
    %423 = vmatprep.subr.bf16.mxu0 0
    %424 = vmatpush1.bf16.xpose.msra.mxu0 %v400
    %425 = vmatprep.subr.bf16.mxu0 0
    %426 = vmatpush1.bf16.xpose.msra.mxu0 0
    %427 = vmatprep.subr.bf16.mxu0 0
    %428 = vmatpush1.bf16.xpose.msra.mxu0 0
    %429 = vmatprep.subr.bf16.mxu0 0
    %430 = vmatpush1.bf16.xpose.msra.mxu0 0
    %431 = vmatprep.subr.bf16.mxu0 0
    %432 = vmatpush1.bf16.xpose.msra.mxu0 0
    %433 = vmatprep.subr.bf16.mxu0 0
    %434 = vmatpush1.bf16.xpose.msra.mxu0 0
    %435 = vmatprep.subr.bf16.mxu0 0
    %436 = vmatpush1.bf16.xpose.msra.mxu0 0
    %437 = vmatprep.subr.bf16.mxu0 0
    %438 = vmatpush1.bf16.xpose.msra.mxu0 0
    %439 = vmatprep.subr.bf16.mxu0 0
    %440 = vmatpush1.bf16.xpose.msra.mxu0 0
    %441 = vmatprep.mubr.bf16.mxu0 0
    %442 = vmatmul.mubr.bf16.gmra.mrb[0].mxu0 %v225
    %v443 = vpop.f32.mrb[0].mxu0
    %v444 = vadd.f32 %v359, %v443
    %v445 = vpop.f32.mrb[0].mxu0
    %v446 = vpop.f32.mrb[0].mxu0
    %v447 = vpop.f32.mrb[0].mxu0
    %448 = vdwg.mxu0
    %v449 = vld [vmem:[#allocation10] sm:$0xf]
    %v450 = vld [vmem:[#allocation10 + $0x4] sm:$0xf]
    %v451 = vld [vmem:[#allocation10 + $0x8] sm:$0xf]
    %v452 = vld [vmem:[#allocation10 + $0xc] sm:$0xf]
    %v453 = vld [vmem:[#allocation10 + $0x10] sm:$0xf]
    %v454 = vld [vmem:[#allocation10 + $0x14] sm:$0xf]
    %v455 = vld [vmem:[#allocation10 + $0x18] sm:$0xf]
    %v456 = vld [vmem:[#allocation10 + $0x1c] sm:$0xf]
    %v457 = vld [vmem:[#allocation10 + $0x20] sm:$0xf]
    %v458 = vld [vmem:[#allocation10 + $0x24] sm:$0xf]
    %v459 = vld [vmem:[#allocation10 + $0x28] sm:$0xf]
    %v460 = vld [vmem:[#allocation10 + $0x2c] sm:$0xf]
    %v461 = vld [vmem:[#allocation10 + $0x30] sm:$0xf]
    %v462 = vld [vmem:[#allocation10 + $0x34] sm:$0xf]
    %v463 = vld [vmem:[#allocation10 + $0x38] sm:$0xf]
    %v464 = vld [vmem:[#allocation10 + $0x3c] sm:$0xf]
    %v481 = vunpack.c.l.b16 %v449
    %v482 = vunpack.c.l.b16 %v450
    %v483 = vunpack.c.l.b16 %v451
    %v484 = vunpack.c.l.b16 %v452
    %v485 = vunpack.c.l.b16 %v453
    %v486 = vunpack.c.l.b16 %v454
    %v487 = vunpack.c.l.b16 %v455
    %v488 = vunpack.c.l.b16 %v456
    %v489 = vunpack.c.l.b16 %v457
    %v490 = vunpack.c.l.b16 %v458
    %v491 = vunpack.c.l.b16 %v459
    %v492 = vunpack.c.l.b16 %v460
    %v493 = vunpack.c.l.b16 %v461
    %v494 = vunpack.c.l.b16 %v462
    %v495 = vunpack.c.l.b16 %v463
    %v496 = vunpack.c.l.b16 %v464
    %v497 = vpack.c.b16 %v482, %v481
    %v498 = vpack.c.b16 %v484, %v483
    %v499 = vpack.c.b16 %v486, %v485
    %v500 = vpack.c.b16 %v488, %v487
    %v501 = vpack.c.b16 %v490, %v489
    %v502 = vpack.c.b16 %v492, %v491
    %v503 = vpack.c.b16 %v494, %v493
    %v504 = vpack.c.b16 %v496, %v495
    %513 = vmatprep.subr.bf16.mxu0 0
    %514 = vmatpush1.bf16.xpose.msra.mxu0 %v497
    %515 = vmatprep.subr.bf16.mxu0 0
    %516 = vmatpush1.bf16.xpose.msra.mxu0 %v498
    %517 = vmatprep.subr.bf16.mxu0 0
    %518 = vmatpush1.bf16.xpose.msra.mxu0 %v499
    %519 = vmatprep.subr.bf16.mxu0 0
    %520 = vmatpush1.bf16.xpose.msra.mxu0 %v500
    %521 = vmatprep.subr.bf16.mxu0 0
    %522 = vmatpush1.bf16.xpose.msra.mxu0 %v501
    %523 = vmatprep.subr.bf16.mxu0 0
    %524 = vmatpush1.bf16.xpose.msra.mxu0 %v502
    %525 = vmatprep.subr.bf16.mxu0 0
    %526 = vmatpush1.bf16.xpose.msra.mxu0 %v503
    %527 = vmatprep.subr.bf16.mxu0 0
    %528 = vmatpush1.bf16.xpose.msra.mxu0 %v504
    %529 = vmatprep.subr.bf16.mxu0 0
    %530 = vmatpush1.bf16.xpose.msra.mxu0 0
    %531 = vmatprep.subr.bf16.mxu0 0
    %532 = vmatpush1.bf16.xpose.msra.mxu0 0
    %533 = vmatprep.subr.bf16.mxu0 0
    %534 = vmatpush1.bf16.xpose.msra.mxu0 0
    %535 = vmatprep.subr.bf16.mxu0 0
    %536 = vmatpush1.bf16.xpose.msra.mxu0 0
    %537 = vmatprep.subr.bf16.mxu0 0
    %538 = vmatpush1.bf16.xpose.msra.mxu0 0
    %539 = vmatprep.subr.bf16.mxu0 0
    %540 = vmatpush1.bf16.xpose.msra.mxu0 0
    %541 = vmatprep.subr.bf16.mxu0 0
    %542 = vmatpush1.bf16.xpose.msra.mxu0 0
    %543 = vmatprep.subr.bf16.mxu0 0
    %544 = vmatpush1.bf16.xpose.msra.mxu0 0
    %545 = vmatprep.mubr.bf16.mxu0 0
    %546 = vmatmul.mubr.bf16.gmra.mrb[0].mxu0 %v338
    %v547 = vpop.f32.mrb[0].mxu0
    %v548 = vadd.f32 %v359, %v547
    %v549 = vpop.f32.mrb[0].mxu0
    %v550 = vpop.f32.mrb[0].mxu0
    %v551 = vpop.f32.mrb[0].mxu0
    %552 = vdwg.mxu0
    %553 = vmax.xlane.f32.xlu0 %v444
    %v554 = vpop.xlane.xlu0 %553
    %v555 = vsub.f32 %v444, %v554
    %v556 = vmul.f32 %v555, 1.442695
    %v557 = vpow.pop %v556
    %558 = vadd.xlane.f32.xlu0 %v557
    %v559 = vpop.xlane.xlu0 %558
    %v560 = vrcp.pop %v559
    %v561 = vmul.f32 %v557, %v560
    %562 = vmax.xlane.f32.xlu0 %v548
    %v563 = vpop.xlane.xlu0 %562
    %v564 = vsub.f32 %v548, %v563
    %v565 = vmul.f32 %v564, 1.442695
    %v566 = vpow.pop %v565
    %567 = vadd.xlane.f32.xlu0 %v566
    %v568 = vpop.xlane.xlu0 %567
    %v569 = vrcp.pop %v568
    %v570 = vmul.f32 %v566, %v569
    %v571 = vmul.f32 %v561, 0.9
    %v572 = vmul.f32 %v570, 0.1
    %v573 = vadd.f32 %v571, %v572
    %v574 = vpack.c.bf16 %v573, %v573
    %v575 = vld [vmem:[#allocation8] sm:$0xf]
    %v576 = vld [vmem:[#allocation8 + $0x4] sm:$0xf]
    %v577 = vld [vmem:[#allocation8 + $0x8] sm:$0xf]
    %v578 = vld [vmem:[#allocation8 + $0xc] sm:$0xf]
    %v579 = vld [vmem:[#allocation8 + $0x10] sm:$0xf]
    %v580 = vld [vmem:[#allocation8 + $0x14] sm:$0xf]
    %v581 = vld [vmem:[#allocation8 + $0x18] sm:$0xf]
    %v582 = vld [vmem:[#allocation8 + $0x1c] sm:$0xf]
    %v583 = vld [vmem:[#allocation8 + $0x20] sm:$0xf]
    %v584 = vld [vmem:[#allocation8 + $0x24] sm:$0xf]
    %v585 = vld [vmem:[#allocation8 + $0x28] sm:$0xf]
    %v586 = vld [vmem:[#allocation8 + $0x2c] sm:$0xf]
    %v587 = vld [vmem:[#allocation8 + $0x30] sm:$0xf]
    %v588 = vld [vmem:[#allocation8 + $0x34] sm:$0xf]
    %v589 = vld [vmem:[#allocation8 + $0x38] sm:$0xf]
    %v590 = vld [vmem:[#allocation8 + $0x3c] sm:$0xf]
    %v607 = vunpack.c.l.b16 %v575
    %v608 = vunpack.c.l.b16 %v576
    %v609 = vunpack.c.l.b16 %v577
    %v610 = vunpack.c.l.b16 %v578
    %v611 = vunpack.c.l.b16 %v579
    %v612 = vunpack.c.l.b16 %v580
    %v613 = vunpack.c.l.b16 %v581
    %v614 = vunpack.c.l.b16 %v582
    %v615 = vunpack.c.l.b16 %v583
    %v616 = vunpack.c.l.b16 %v584
    %v617 = vunpack.c.l.b16 %v585
    %v618 = vunpack.c.l.b16 %v586
    %v619 = vunpack.c.l.b16 %v587
    %v620 = vunpack.c.l.b16 %v588
    %v621 = vunpack.c.l.b16 %v589
    %v622 = vunpack.c.l.b16 %v590
    %v623 = vpack.c.b16 %v608, %v607
    %v624 = vpack.c.b16 %v610, %v609
    %v625 = vpack.c.b16 %v612, %v611
    %v626 = vpack.c.b16 %v614, %v613
    %v627 = vpack.c.b16 %v616, %v615
    %v628 = vpack.c.b16 %v618, %v617
    %v629 = vpack.c.b16 %v620, %v619
    %v630 = vpack.c.b16 %v622, %v621
    %639 = vmatprep.subr.bf16.mxu0 0
    %640 = vmatpush1.bf16.msra.mxu0 %v623
    %641 = vmatprep.subr.bf16.mxu0 0
    %642 = vmatpush1.bf16.msra.mxu0 %v624
    %643 = vmatprep.subr.bf16.mxu0 0
    %644 = vmatpush1.bf16.msra.mxu0 %v625
    %645 = vmatprep.subr.bf16.mxu0 0
    %646 = vmatpush1.bf16.msra.mxu0 %v626
    %647 = vmatprep.subr.bf16.mxu0 0
    %648 = vmatpush1.bf16.msra.mxu0 %v627
    %649 = vmatprep.subr.bf16.mxu0 0
    %650 = vmatpush1.bf16.msra.mxu0 %v628
    %651 = vmatprep.subr.bf16.mxu0 0
    %652 = vmatpush1.bf16.msra.mxu0 %v629
    %653 = vmatprep.subr.bf16.mxu0 0
    %654 = vmatpush1.bf16.msra.mxu0 %v630
    %655 = vmatprep.subr.bf16.mxu0 0
    %656 = vmatpush1.bf16.msra.mxu0 0
    %657 = vmatprep.subr.bf16.mxu0 0
    %658 = vmatpush1.bf16.msra.mxu0 0
    %659 = vmatprep.subr.bf16.mxu0 0
    %660 = vmatpush1.bf16.msra.mxu0 0
    %661 = vmatprep.subr.bf16.mxu0 0
    %662 = vmatpush1.bf16.msra.mxu0 0
    %663 = vmatprep.subr.bf16.mxu0 0
    %664 = vmatpush1.bf16.msra.mxu0 0
    %665 = vmatprep.subr.bf16.mxu0 0
    %666 = vmatpush1.bf16.msra.mxu0 0
    %667 = vmatprep.subr.bf16.mxu0 0
    %668 = vmatpush1.bf16.msra.mxu0 0
    %669 = vmatprep.subr.bf16.mxu0 0
    %670 = vmatpush1.bf16.msra.mxu0 0
    %671 = vmatprep.mubr.bf16.mxu0 0
    %672 = vmatmul.mubr.bf16.gmra.mrb[0].mxu0 %v574
    %v673 = vpop.f32.mrb[0].mxu0
    %v674 = vadd.f32 0.0, %v673
    %v675 = vpop.f32.mrb[0].mxu0
    %v676 = vpop.f32.mrb[0].mxu0
    %v677 = vpop.f32.mrb[0].mxu0
    %678 = vdwg.mxu0
    %679 = vst [vmem:[#allocation13] sm:$0xff] %v674
    %680 = vst [vmem:[#allocation14] sm:$0xf] %v574
    // Predicated region
    $region58: #{tpu_custom_call.1} parent=1 // pred_check
      _
    $region59: #{tpu_custom_call.1} parent=1 // pred_check_branch
      %682 = sbr.rel (0) target = $region61
    $region60: #{tpu_custom_call.1} parent=1 // pred_region
      %s684 = ssub.s32 128, 128
      %685 = vsyncadd [#allocation4], %s684
      %s687 = sshll.u32 [#allocation13], 4
      %s688 = int_to_ptr.vmem [resolvable:$true] %s687
      %690 = dma.vmem_to_hbm [thread:$0]  %s688, 128, %s8, [#allocation4]
    $region61: #{tpu_custom_call.1} parent=1 // pred_fallthru
      _
    // Predicated region
    $region62: #{tpu_custom_call.1} parent=1 // pred_check
      _
    $region63: #{tpu_custom_call.1} parent=1 // pred_check_branch
      %692 = sbr.rel (0) target = $region65
    $region64: #{tpu_custom_call.1} parent=1 // pred_region
      %s694 = ssub.s32 64, 64
      %695 = vsyncadd [#allocation15], %s694
      %s697 = sshll.u32 [#allocation14], 4
      %s698 = int_to_ptr.vmem [resolvable:$true] %s697
      %700 = dma.vmem_to_hbm [thread:$0]  %s698, 64, %s9, [#allocation15]
    $region65: #{tpu_custom_call.1} parent=1 // pred_fallthru
      _
    // Predicated region
    $region66: #{tpu_custom_call.1} parent=1 // pred_check
      _
    $region67: #{tpu_custom_call.1} parent=1 // pred_check_branch
      %702 = sbr.rel (0) target = $region69
    $region68: #{tpu_custom_call.1} parent=1 // pred_region
      %703 = dma.done [#allocation4], 128
    $region69: #{tpu_custom_call.1} parent=1 // pred_fallthru
      _
    // Predicated region
    $region70: #{tpu_custom_call.1} parent=1 // pred_check
      _
    $region71: #{tpu_custom_call.1} parent=1 // pred_check_branch
      %705 = sbr.rel (0) target = $region73
    $region72: #{tpu_custom_call.1} parent=1 // pred_region
      %706 = dma.done [#allocation15], 64
    $region73: #{tpu_custom_call.1} parent=1 // pred_fallthru
      _
    %707 = vsyncpa [#allocation3], 1
    %708 = vsyncpa [#allocation6], 1
    %709 = vsyncpa [#allocation9], 1
    %710 = vsyncpa [#allocation12], 1
    %711 = vsyncpa [#allocation4], 1
    %712 = vsyncpa [#allocation15], 1

</llo_original>
